<compile_context>
chip_gen: v7x
topology: tpu7x:2x2x1
jax: 0.10.0
libtpu: 0.0.40
codegen_flags: <defaults>
</compile_context>

<pallas_src>
import functools

import jax
import jax.numpy as jnp
from jax.experimental import pallas as pl
from jax.experimental.pallas import tpu as pltpu


def _rel_pos_kernel(padded_ref, out_ref, *, max_len: int, seq_len: int,
                    row_tile: int):
    # padded_ref: (P, D) clamp-padded table, P = (2*max_len - 1) + 2*(S - 1),
    #             resident in VMEM across the whole grid.
    # out_ref   : (row_tile, S, D) output tile for query rows
    #             [pid*row_tile, (pid+1)*row_tile).
    #
    # out[i, j, :] = emb[clamp(j - i + max_len - 1, 0, V-1)]
    #              = padded[(max_len - 1) + (S - 1) - i + j, :]
    base = (max_len - 1) + (seq_len - 1) - pl.program_id(0) * row_tile
    for local_i in range(row_tile):            # small, fully unrolled
        out_ref[local_i, :, :] = padded_ref[pl.ds(base - local_i, seq_len), :]


def _choose_row_tile(seq_len: int, d_model: int, itemsize: int,
                     vmem_budget_bytes: int = 4 * 1024 * 1024,
                     max_unroll: int = 64) -> int:
    """Largest divisor of seq_len such that the double-buffered output tile
    fits a conservative VMEM budget (safe on v7x's 64 MiB VMEM and v5e/v6e
    scoped defaults), capped so the in-kernel unroll stays small and the grid
    has enough steps to pipeline / split across TensorCores."""
    per_row_bytes = seq_len * d_model * itemsize
    cap = max(1, vmem_budget_bytes // (2 * per_row_bytes))
    cap = min(cap, max_unroll, max(1, seq_len // 8), seq_len)
    tile = 1
    for t in range(1, seq_len + 1):
        if seq_len % t == 0 and t <= cap:
            tile = t
    return tile


def relative_position_encoding(embedding: jax.Array, seq_len: int,
                               max_len: int) -> jax.Array:
    """Pallas equivalent of RelativePositionEncoding.forward(seq_len)."""
    V, D = embedding.shape
    assert V == 2 * max_len - 1

    # Clamp-padded table (built once; tiny vs. the (S,S,D) output):
    #   padded[k] == embedding[clamp(k - (seq_len - 1), 0, V - 1)]
    pad = max(seq_len - 1, 0)
    front = jnp.broadcast_to(embedding[0:1, :], (pad, D))
    back = jnp.broadcast_to(embedding[V - 1:V, :], (pad, D))
    padded = jnp.concatenate([front, embedding, back], axis=0)
    P = padded.shape[0]

    row_tile = _choose_row_tile(seq_len, D, embedding.dtype.itemsize)
    grid = (seq_len // row_tile,)

    kernel = functools.partial(_rel_pos_kernel, max_len=max_len,
                               seq_len=seq_len, row_tile=row_tile)

    # TODO(synk): for D < 128 (only 32/128 lanes live per store here) a
    # lane-dense (S, S*D) output layout would further help v5e's single store
    # slot; skipped since the in-kernel (S, D) -> (S*D,) relayout is not
    # obviously a win without measurement.
    # TODO(synk): the (S, S, D) output has only 2S-1 distinct (j - i) rows; if
    # the consumer allowed it, emitting the compact (2S-1, D) gather and
    # broadcasting lazily downstream would cut HBM writeback by O(S).
    return pl.pallas_call(
        kernel,
        out_shape=jax.ShapeDtypeStruct((seq_len, seq_len, D), embedding.dtype),
        grid_spec=pltpu.PrefetchScalarGridSpec(
            num_scalar_prefetch=0,
            grid=grid,
            in_specs=[pl.BlockSpec((P, D), lambda i: (0, 0))],  # VMEM-resident
            out_specs=pl.BlockSpec((row_tile, seq_len, D),
                                   lambda i: (i, 0, 0)),
        ),
        compiler_params=pltpu.CompilerParams(
            dimension_semantics=("parallel",),
            vmem_limit_bytes=32 * 1024 * 1024,
        ),
    )(padded)


def _reference(embedding: jax.Array, seq_len: int, max_len: int) -> jax.Array:
    positions = jnp.arange(seq_len)
    rel = positions[None, :] - positions[:, None] + (max_len - 1)
    rel = jnp.clip(rel, 0, 2 * max_len - 2)
    return embedding[rel]


if __name__ == "__main__":
    d_model = 32
    max_len = 8               # embedding table: (2*8 - 1, 32) = (15, 32)
    seq_len = 16              # > max_len so the clamp path is exercised

    key = jax.random.PRNGKey(0)
    # Deterministic stand-in for torch.randn(2*max_len - 1, d_model)
    embedding = jax.random.normal(key, (2 * max_len - 1, d_model),
                                  dtype=jnp.float32)

    out = relative_position_encoding(embedding, seq_len, max_len)
    out = jax.block_until_ready(out)

    ref = _reference(embedding, seq_len, max_len)
    assert out.shape == (seq_len, seq_len, d_model)
    assert jnp.allclose(out, ref, atol=1e-6, rtol=1e-6), "mismatch vs reference"

    print("KERNEL_OK")
</pallas_src>

<mosaic_0001>
module attributes {stable_mosaic.version = 11 : i64} {
  func.func @_rel_pos_kernel(%arg0: i32, %arg1: memref<45x32xf32, #tpu.memory_space<vmem>>, %arg2: memref<2x16x32xf32, #tpu.memory_space<vmem>>) attributes {dimension_semantics = [#tpu.dimension_semantics<parallel>], iteration_bounds = array<i64: 8>, scalar_prefetch = 0 : i64, scratch_operands = 0 : i64, tpu.core_type = #tpu.core_type<tc>, window_params = [{pipeline_mode = #tpu.pipeline_mode<synchronous>, transform_indices = @transform_0, window_bounds = array<i64: 45, 32>}, {transform_indices = @transform_1, window_bounds = array<i64: 2, 16, 32>}]} {
    %c2_i32 = arith.constant 2 : i32
    %0 = arith.muli %arg0, %c2_i32 : i32
    %c22_i32 = arith.constant 22 : i32
    %1 = arith.subi %c22_i32, %0 : i32
    %c0_i32 = arith.constant 0 : i32
    %2 = arith.subi %1, %c0_i32 : i32
    %3 = arith.index_cast %2 : i32 to index
    %c0 = arith.constant 0 : index
    %4 = vector.load %arg1[%3, %c0] : memref<45x32xf32, #tpu.memory_space<vmem>>, vector<16x32xf32>
    %c0_0 = arith.constant 0 : index
    %c0_1 = arith.constant 0 : index
    %c0_2 = arith.constant 0 : index
    %5 = vector.load %arg2[%c0_0, %c0_1, %c0_2] : memref<2x16x32xf32, #tpu.memory_space<vmem>>, vector<1x16x32xf32>
    %6 = vector.shape_cast %5 : vector<1x16x32xf32> to vector<16x32xf32>
    %7 = vector.shape_cast %4 : vector<16x32xf32> to vector<1x16x32xf32>
    tpu.vector_store %arg2[%c0_0, %c0_1, %c0_2], %7 {strides = array<i32>} : memref<2x16x32xf32, #tpu.memory_space<vmem>>, vector<1x16x32xf32>,
    %c1_i32 = arith.constant 1 : i32
    %8 = arith.subi %1, %c1_i32 : i32
    %9 = arith.index_cast %8 : i32 to index
    %c0_3 = arith.constant 0 : index
    %10 = vector.load %arg1[%9, %c0_3] : memref<45x32xf32, #tpu.memory_space<vmem>>, vector<16x32xf32>
    %c1 = arith.constant 1 : index
    %c0_4 = arith.constant 0 : index
    %c0_5 = arith.constant 0 : index
    %11 = vector.load %arg2[%c1, %c0_4, %c0_5] : memref<2x16x32xf32, #tpu.memory_space<vmem>>, vector<1x16x32xf32>
    %12 = vector.shape_cast %11 : vector<1x16x32xf32> to vector<16x32xf32>
    %13 = vector.shape_cast %10 : vector<16x32xf32> to vector<1x16x32xf32>
    tpu.vector_store %arg2[%c1, %c0_4, %c0_5], %13 {strides = array<i32>} : memref<2x16x32xf32, #tpu.memory_space<vmem>>, vector<1x16x32xf32>,
    return
  }
  func.func @transform_0(%arg0: i32) -> (i32, i32) {
    %c0_i32 = arith.constant 0 : i32
    %c0_i32_0 = arith.constant 0 : i32
    %c0_i32_1 = arith.constant 0 : i32
    return %c0_i32, %c0_i32_0 : i32, i32
  }
  func.func @transform_1(%arg0: i32) -> (i32, i32, i32) {
    %c0_i32 = arith.constant 0 : i32
    %c0_i32_0 = arith.constant 0 : i32
    %c0_i32_1 = arith.constant 0 : i32
    return %arg0, %c0_i32, %c0_i32_0 : i32, i32, i32
  }
}

</mosaic_0001>

<llo_original>
// kernel: tpu_custom_call.1
$region0: #{tpu_custom_call.1}
  #allocation0 [shape = 'u32[]', space=smem, size = 0x4, offset = 0x4, fixed_abs, tag = 'smem constant byte address 0x4 - core index']
  #allocation1 [shape = 'u32[144,128]{1,0:T(1,128)}', space=vmem, size = 0x12000, scoped, tag = 'internal scratch']
  %s0 = inlined_call_operand.vmem [shape: f32[45,32], index: 0, kind: input, shape index: {}]
  %s1 = inlined_call_operand.hbm [shape: f32[16,16,32], index: 1, kind: output, shape index: {}]
  %s2 = sld [smem:[#allocation0]]
  $region37: #{tpu_custom_call.1} parent=0
    _
  %s4 = ssub.s32 1, %s2
  %s5 = scalar_select 0, %s4, %s2
  $region1: #{tpu_custom_call.1} parent=0
    #allocation2 [shape = 'u8[32768]{0}', space=vmem, size = 0x8000, scoped, tag = 'output window, operand 0']
    #allocation3 [shape = 's32[2]{0}', space=sflag, size = 0x8, scoped, tag = 'scoped memory for tpu_custom_call.1']
    %6 = vsyncpa [#allocation3], 0
    %s7 = scalar_lea.sflag [#allocation3], 1
    %8 = vsyncpa %s7, 0
    loop: start=0, step=1, limit=10
    $region2: #{tpu_custom_call.1} parent=1 // loop_pre_header
      _
    $region3: #{tpu_custom_call.1} parent=1 // loop_header
      %s10 = sphi 0, %s14
      %p11 = scmp.ge.s32.totalorder %s10, 10
      %s18 = sphi 0, %s18
      %s20 = sphi 0, %s18
      %s21 = sphi 0, %s20
      %s35 = sphi 0, %s21
      %s41 = sphi 0, %s43
      %s44 = sphi 0, %s41
      %s45 = sphi 0, %s44
      %s61 = sphi 0, %s45
    $region4: #{tpu_custom_call.1} parent=1 // loop_header_branch
      %13 = sbr.rel (%p11) target = $region8
    $region5: #{tpu_custom_call.1} parent=1 // loop_body
      %s15 = ssub.s32 %s10, 1
      %s16 = ssub.s32 %s10, 2
      %s17 = sadd.s32 %s10, 1
      %s19 = sadd.s32 %s18, 1
      %p22 = scmp.eq.s32.totalorder %s10, 7
      %p23 = scmp.ne.s32.totalorder %s18, %s20
      %p24 = scmp.eq.s32.totalorder %s10, 0
      %p25 = por %p23, %p24
      %p26 = scmp.ne.s32.totalorder %s18, %s20
      %p27 = scmp.eq.s32.totalorder %s15, 7
      %p28 = por %p26, %p27
      %p29 = scmp.ne.s32.totalorder %s20, %s21
      %p30 = scmp.eq.s32.totalorder %s15, 0
      %p31 = por %p29, %p30
      %p32 = scmp.ne.s32.totalorder %s20, %s21
      %p33 = scmp.eq.s32.totalorder %s16, 7
      %p34 = por %p32, %p33
      %p36 = scmp.ne.s32.totalorder %s21, %s35
      %p37 = scmp.eq.s32.totalorder %s16, 0
      %p38 = por %p36, %p37
      %s39 = ssub.s32 %s10, %s17
      %p40 = scmp.eq.s32.totalorder %s39, 0
      %s42 = sadd.s32 %s41, 1
      %s43 = scalar_select %p40, %s41, %s42
      %p46 = pneg %p40
      %p47 = scmp.eq.s32.totalorder %s10, 7
      %p48 = por %p46, %p47
      %p49 = scmp.ne.s32.totalorder %s41, %s44
      %p50 = scmp.eq.s32.totalorder %s10, 0
      %p51 = por %p49, %p50
      %p52 = scmp.ne.s32.totalorder %s41, %s44
      %p53 = scmp.eq.s32.totalorder %s15, 7
      %p54 = por %p52, %p53
      %p55 = scmp.ne.s32.totalorder %s44, %s45
      %p56 = scmp.eq.s32.totalorder %s15, 0
      %p57 = por %p55, %p56
      %p58 = scmp.ne.s32.totalorder %s44, %s45
      %p59 = scmp.eq.s32.totalorder %s16, 7
      %p60 = por %p58, %p59
      %p62 = scmp.ne.s32.totalorder %s45, %s61
      %p63 = scmp.eq.s32.totalorder %s16, 0
      %p64 = por %p62, %p63
      %p65 = scmp.le.s32.totalorder 1, %s10
      %p66 = scmp.lt.s32.totalorder %s10, 9
      %p67 = pnand %p65, %p66
      %p68 = pneg %p67
      // Predicated region
      $region9: #{tpu_custom_call.1} parent=5 // pred_check
        _
      $region10: #{tpu_custom_call.1} parent=5 // pred_check_branch
        %70 = sbr.rel (%p67) target = $region12
      $region11: #{tpu_custom_call.1} parent=5 // pred_region
        %s71 = ssub.s32 %s10, 1
        // Predicated region
        $region13: #{tpu_custom_call.1} parent=11 // pred_check
          %p72 = pneg %p31
        $region14: #{tpu_custom_call.1} parent=11 // pred_check_branch
          %74 = sbr.rel (%p72) target = $region16
        $region15: #{tpu_custom_call.1} parent=11 // pred_region
          _
        $region16: #{tpu_custom_call.1} parent=11 // pred_fallthru
          _
      $region12: #{tpu_custom_call.1} parent=5 // pred_fallthru
        _
      %p75 = scmp.lt.s32.totalorder %s10, 8
      // Predicated region
      $region17: #{tpu_custom_call.1} parent=5 // pred_check
        %p76 = pneg %p75
      $region18: #{tpu_custom_call.1} parent=5 // pred_check_branch
        %78 = sbr.rel (%p76) target = $region20
      $region19: #{tpu_custom_call.1} parent=5 // pred_region
        _
      $region20: #{tpu_custom_call.1} parent=5 // pred_fallthru
        _
      %p79 = scmp.le.s32.totalorder 1, %s10
      %p80 = scmp.lt.s32.totalorder %s10, 9
      %p81 = pnand %p79, %p80
      %p82 = pneg %p81
      // Predicated region
      $region21: #{tpu_custom_call.1} parent=5 // pred_check
        _
      $region22: #{tpu_custom_call.1} parent=5 // pred_check_branch
        %84 = sbr.rel (%p81) target = $region24
      $region23: #{tpu_custom_call.1} parent=5 // pred_region
        %s85 = ssub.s32 %s10, 1
        %p86 = pneg %p31
        %p87 = pneg %p28
        %p88 = pneg %p57
        %p89 = pneg %p54
        %s90 = sand.u32 %s44, 1
        %s91 = scalar_lea.sflag [#allocation3], %s90
        %s92 = sand.u32 %s44, 1
        %s93 = smul.addr %s92, 32
        %s94 = scalar_lea.vmem [#allocation2], %s93
        %s95 = smul.u32 2, %s15
        %s96 = smul.u32 %s15, 2
        %s97 = ssub.s32 22, %s96
        %s98 = scalar_lea.vmem %s0, %s97
        %v99 = vld [vmem:[%s98] sm:$0xff]
        %v100 = vld [vmem:[%s98 + $0x8] sm:$0xff]
        %vm101 = vcmask 261120
        %102 = vst.msk [vmem:[%s94] sm:$0xff] %vm101, %v99
        %103 = vst.msk [vmem:[%s94 + $0x8] sm:$0xff] %vm101, %v100
        %s104 = ssub.s32 21, %s96
        %s105 = scalar_lea.vmem %s0, %s104
        %v106 = vld [vmem:[%s105] sm:$0xff]
        %v107 = vld [vmem:[%s105 + $0x8] sm:$0xff]
        %s108 = scalar_lea.vmem %s94, 16 [#allocation2]
        %109 = vst.msk [vmem:[%s108] sm:$0xff] %vm101, %v106
        %110 = vst.msk [vmem:[%s108 + $0x8] sm:$0xff] %vm101, %v107
        %s111 = sand.u32 %s44, 1
        %s112 = scalar_lea.sflag [#allocation3], %s111
        %s113 = sand.u32 %s44, 1
        %s114 = smul.addr %s113, 32
        %s115 = scalar_lea.vmem [#allocation2], %s114
        // Predicated region
        $region25: #{tpu_custom_call.1} parent=23 // pred_check
          %p116 = pneg %p54
        $region26: #{tpu_custom_call.1} parent=23 // pred_check_branch
          %118 = sbr.rel (%p116) target = $region28
        $region27: #{tpu_custom_call.1} parent=23 // pred_region
          %s119 = smul.u32 2, %s15
          %s121 = ssub.s32 512, 512
          %122 = vsyncadd %s112, %s121
          %s123 = smul.addr %s119, 2
          %s124 = smul.addr %s123, 128
          %s125 = scalar_lea.hbm %s1, %s124
          %s126 = sshll.u32 %s115, 4
          %s127 = int_to_ptr.vmem [resolvable:$true] %s126
          %132 = dma.vmem_to_hbm [thread:$0]  %s127, 512, %s125, %s112, 128, 128, 8
        $region28: #{tpu_custom_call.1} parent=23 // pred_fallthru
          _
      $region24: #{tpu_custom_call.1} parent=5 // pred_fallthru
        _
      %p133 = scmp.le.s32.totalorder 2, %s10
      // Predicated region
      $region29: #{tpu_custom_call.1} parent=5 // pred_check
        %p134 = pneg %p133
      $region30: #{tpu_custom_call.1} parent=5 // pred_check_branch
        %136 = sbr.rel (%p134) target = $region32
      $region31: #{tpu_custom_call.1} parent=5 // pred_region
        %s137 = ssub.s32 %s10, 2
        // Predicated region
        $region33: #{tpu_custom_call.1} parent=31 // pred_check
          %p138 = pneg %p60
        $region34: #{tpu_custom_call.1} parent=31 // pred_check_branch
          %140 = sbr.rel (%p138) target = $region36
        $region35: #{tpu_custom_call.1} parent=31 // pred_region
          %s141 = sand.u32 %s45, 1
          %s142 = scalar_lea.sflag [#allocation3], %s141
          %s143 = sand.u32 %s45, 1
          %s144 = smul.addr %s143, 32
          %s145 = scalar_lea.vmem [#allocation2], %s144
          %146 = dma.done %s142, 512
        $region36: #{tpu_custom_call.1} parent=31 // pred_fallthru
          _
      $region32: #{tpu_custom_call.1} parent=5 // pred_fallthru
        _
    $region6: #{tpu_custom_call.1} parent=1 // loop_footer
      %s14 = sadd.s32 1, %s10
    $region7: #{tpu_custom_call.1} parent=1 // loop_footer_branch
      %9 = sbr.rel target = $region3
    $region8: #{tpu_custom_call.1} parent=1 // loop_exit
      _
    %147 = vsyncpa [#allocation3], 1
    %s148 = scalar_lea.sflag [#allocation3], 1
    %149 = vsyncpa %s148, 1

</llo_original>
